<compile_context>
chip_gen: v5e
topology: v5e:2x2
jax: 0.10.0
libtpu: 0.0.40
codegen_flags: <defaults>
</compile_context>

<pallas_src>
import jax
import jax.numpy as jnp
from jax.experimental import pallas as pl
from jax.experimental.pallas import tpu as pltpu

# Tunables (conservative across v5e / v6e / v7x).
_TARGET_TILE_BYTES = 2 * 1024 * 1024      # ~2 MiB per input tile
_VMEM_LIMIT_BYTES = 32 * 1024 * 1024      # >> 4 x tile bytes, within v7x scoped VMEM
_LANE_CANDIDATES = (2048, 1024, 512, 256, 128)
_MIN_PALLAS_BYTES = 256 * 1024            # below this, XLA's fused multiply wins


def _scaler_kernel(s_ref, x_ref, o_ref):
    # s_ref: (1,) scalar in SMEM; x_ref / o_ref: (tile_rows, lane) VMEM tiles.
    o_ref[...] = x_ref[...] * s_ref[0]


def scaler_forward(x: jax.Array, S: jax.Array, *,
                   min_pallas_bytes: int = _MIN_PALLAS_BYTES) -> jax.Array:
    """Compute S * x (S is a shape-(1,) learnable scalar) with a Pallas TPU kernel."""
    total = x.size
    nbytes = total * x.dtype.itemsize

    # Fast path: tiny inputs (launch + per-step overhead dominates) or element
    # counts we cannot reshape lane-densely without padding.
    if total == 0 or nbytes < min_pallas_bytes or total % 128 != 0:
        return (S.reshape(()) * x).astype(x.dtype)

    # Lane-dense flattening: last axis is the largest candidate multiple of 128
    # that divides the element count.
    lane = next(w for w in _LANE_CANDIDATES if total % w == 0)
    rows = total // lane
    x2d = x.reshape(rows, lane)

    # Row tiling: biggest tile near the ~2 MiB target, keeping (8, 128) alignment.
    bytes_per_row = lane * x.dtype.itemsize
    target_rows = max(1, _TARGET_TILE_BYTES // bytes_per_row)
    if rows <= target_rows:
        tile_rows = rows                       # single block == full dim (always legal)
    else:
        tile_rows = max(8, (target_rows // 8) * 8)

    grid = (pl.cdiv(rows, tile_rows),)

    # TODO(synk): optionally pass input_output_aliases={1: 0} when the caller
    # can donate x's HBM buffer; omitted here so x stays valid after the call.
    out2d = pl.pallas_call(
        _scaler_kernel,
        out_shape=jax.ShapeDtypeStruct((rows, lane), x.dtype),
        grid=grid,
        in_specs=[
            pl.BlockSpec(memory_space=pltpu.SMEM),               # S scalar in SMEM
            pl.BlockSpec((tile_rows, lane), lambda i: (i, 0)),   # x row tile
        ],
        out_specs=pl.BlockSpec((tile_rows, lane), lambda i: (i, 0)),
        compiler_params=pltpu.CompilerParams(
            dimension_semantics=("parallel",),
            vmem_limit_bytes=_VMEM_LIMIT_BYTES,
        ),
    )(S.reshape(1).astype(x.dtype), x2d)

    return out2d.reshape(x.shape)


if __name__ == "__main__":
    key = jax.random.PRNGKey(0)
    k1, k2 = jax.random.split(key)

    # Deterministic parameter init: init_S = 1.0 (module default), scaled so
    # the multiply is observable.
    init_S = 1.0
    S = jnp.array([init_S * 2.5], dtype=jnp.float32)

    # 1) Small NCHW input matching the module's conv-style usage.
    #    Force the Pallas path (min_pallas_bytes=0) so the kernel is exercised.
    x_small = jax.random.normal(k1, (2, 4, 16, 16), dtype=jnp.float32)
    y_small = scaler_forward(x_small, S, min_pallas_bytes=0)
    y_small = jax.block_until_ready(y_small)
    assert y_small.shape == x_small.shape
    assert jnp.allclose(y_small, S[0] * x_small, atol=1e-6, rtol=1e-6)

    # 2) Moderate activation-sized input to exercise the multi-tile grid path
    #    (4 MiB f32 -> lane=2048, multiple row tiles, double-buffered DMA).
    x_big = jax.random.normal(k2, (8, 16, 64, 128), dtype=jnp.float32)
    y_big = scaler_forward(x_big, S)
    y_big = jax.block_until_ready(y_big)
    assert y_big.shape == x_big.shape
    assert jnp.allclose(y_big, S[0] * x_big, atol=1e-6, rtol=1e-6)

    print("KERNEL_OK")
</pallas_src>

<mosaic_0001>
module attributes {stable_mosaic.version = 11 : i64} {
  func.func @_scaler_kernel(%arg0: i32, %arg1: memref<1xf32, #tpu.memory_space<smem>>, %arg2: memref<1x2048xf32, #tpu.memory_space<vmem>>, %arg3: memref<1x2048xf32, #tpu.memory_space<vmem>>) attributes {dimension_semantics = [#tpu.dimension_semantics<parallel>], iteration_bounds = array<i64: 1>, scalar_prefetch = 0 : i64, scratch_operands = 0 : i64, tpu.core_type = #tpu.core_type<tc>, window_params = [{transform_indices = @transform_0, window_bounds = array<i64: 1>}, {transform_indices = @transform_1, window_bounds = array<i64: 1, 2048>}, {transform_indices = @transform_2, window_bounds = array<i64: 1, 2048>}]} {
    %c0 = arith.constant 0 : index
    %c0_0 = arith.constant 0 : index
    %0 = vector.load %arg2[%c0, %c0_0] : memref<1x2048xf32, #tpu.memory_space<vmem>>, vector<1x2048xf32>
    %c0_1 = arith.constant 0 : index
    %1 = memref.load %arg1[%c0_1] : memref<1xf32, #tpu.memory_space<smem>>
    %2 = vector.broadcast %1 : f32 to vector<1x2048xf32>
    %3 = arith.mulf %0, %2 : vector<1x2048xf32>
    %c0_2 = arith.constant 0 : index
    %c0_3 = arith.constant 0 : index
    %4 = vector.load %arg3[%c0_2, %c0_3] : memref<1x2048xf32, #tpu.memory_space<vmem>>, vector<1x2048xf32>
    tpu.vector_store %arg3[%c0_2, %c0_3], %3 {strides = array<i32>} : memref<1x2048xf32, #tpu.memory_space<vmem>>, vector<1x2048xf32>,
    return
  }
  func.func @transform_0(%arg0: i32) -> i32 {
    %c0_i32 = arith.constant 0 : i32
    %c0_i32_0 = arith.constant 0 : i32
    return %c0_i32 : i32
  }
  func.func @transform_1(%arg0: i32) -> (i32, i32) {
    %c0_i32 = arith.constant 0 : i32
    %c0_i32_0 = arith.constant 0 : i32
    return %arg0, %c0_i32 : i32, i32
  }
  func.func @transform_2(%arg0: i32) -> (i32, i32) {
    %c0_i32 = arith.constant 0 : i32
    %c0_i32_0 = arith.constant 0 : i32
    return %arg0, %c0_i32 : i32, i32
  }
}

</mosaic_0001>

<llo_original>
// kernel: tpu_custom_call.1
$region0: #{tpu_custom_call.1}
  #allocation0 [shape = 'u32[]', space=smem, size = 0x4, offset = 0x4, fixed_abs, tag = 'smem constant byte address 0x4 - core index']
  #allocation1 [shape = 'u32[72,128]{1,0:T(1,128)}', space=vmem, size = 0x9000, scoped, tag = 'internal scratch']
  #allocation2 [shape = 'f32[1]{0:T(128)S(6)}', space=smem, size = 0x200, scoped, tag = 'scoped memory for tpu_custom_call.1']
  %s0 = inlined_call_operand.<no memory space> [shape: f32[1], index: 0, kind: input, shape index: {}]
  %s1 = inlined_call_operand.hbm [shape: f32[1,2048], index: 1, kind: input, shape index: {}]
  %s2 = inlined_call_operand.hbm [shape: f32[1,2048], index: 2, kind: output, shape index: {}]
  %s3 = sld [smem:[#allocation0]]
  $region22: #{tpu_custom_call.1} parent=0
    _
  %s5 = ssub.s32 1, %s3
  %s6 = scalar_select 0, %s5, %s3
  %7 = sst [smem:[#allocation2]] %s0
  $region1: #{tpu_custom_call.1} parent=0
    #allocation3 [shape = 'u8[8192]{0}', space=vmem, size = 0x2000, scoped, tag = 'input window, operand 1, single buffered']
    #allocation4 [shape = 's32[1]{0}', space=sflag, size = 0x4, scoped, tag = 'scoped memory for tpu_custom_call.1']
    #allocation5 [shape = 's32[1]{0}', space=sflag, size = 0x4, scoped, tag = 'scoped memory for tpu_custom_call.1']
    #allocation6 [shape = 'u8[8192]{0}', space=vmem, size = 0x2000, scoped, tag = 'output window, operand 0, single buffered']
    %8 = vsyncpa [#allocation4], 0
    %9 = vsyncpa [#allocation5], 0
    // Predicated region
    $region2: #{tpu_custom_call.1} parent=1 // pred_check
      _
    $region3: #{tpu_custom_call.1} parent=1 // pred_check_branch
      %11 = sbr.rel (0) target = $region5
    $region4: #{tpu_custom_call.1} parent=1 // pred_region
      _
    $region5: #{tpu_custom_call.1} parent=1 // pred_fallthru
      _
    // Predicated region
    $region6: #{tpu_custom_call.1} parent=1 // pred_check
      _
    $region7: #{tpu_custom_call.1} parent=1 // pred_check_branch
      %13 = sbr.rel (0) target = $region9
    $region8: #{tpu_custom_call.1} parent=1 // pred_region
      %15 = vsyncadd [#allocation4], 0
      %s17 = sshll.u32 %s1, 4
      %s18 = int_to_ptr.hbm [resolvable:$true] %s17
      %s19 = sshll.u32 [#allocation3], 4
      %s20 = int_to_ptr.vmem [resolvable:$true] %s19
      %22 = dma.hbm_to_vmem [thread:$0]  %s18, 256, %s20, [#allocation4]
    $region9: #{tpu_custom_call.1} parent=1 // pred_fallthru
      _
    // Predicated region
    $region10: #{tpu_custom_call.1} parent=1 // pred_check
      _
    $region11: #{tpu_custom_call.1} parent=1 // pred_check_branch
      %24 = sbr.rel (0) target = $region13
    $region12: #{tpu_custom_call.1} parent=1 // pred_region
      %26 = dma.done [#allocation4], 256
    $region13: #{tpu_custom_call.1} parent=1 // pred_fallthru
      _
    %v27 = vld [vmem:[#allocation3] sm:$0xff]
    %v28 = vld [vmem:[#allocation3 + $0x8] sm:$0xff]
    %s29 = sld [smem:[#allocation2]]
    %v30 = vstv %s29
    %v31 = vmul.f32 %v27, %v30
    %v32 = vmul.f32 %v28, %v30
    %33 = vst [vmem:[#allocation6] sm:$0xff] %v31
    %34 = vst [vmem:[#allocation6 + $0x8] sm:$0xff] %v32
    // Predicated region
    $region14: #{tpu_custom_call.1} parent=1 // pred_check
      _
    $region15: #{tpu_custom_call.1} parent=1 // pred_check_branch
      %36 = sbr.rel (0) target = $region17
    $region16: #{tpu_custom_call.1} parent=1 // pred_region
      %38 = vsyncadd [#allocation5], 0
      %s40 = sshll.u32 [#allocation6], 4
      %s41 = int_to_ptr.vmem [resolvable:$true] %s40
      %s42 = sshll.u32 %s2, 4
      %s43 = int_to_ptr.hbm [resolvable:$true] %s42
      %45 = dma.vmem_to_hbm [thread:$0]  %s41, 256, %s43, [#allocation5]
    $region17: #{tpu_custom_call.1} parent=1 // pred_fallthru
      _
    // Predicated region
    $region18: #{tpu_custom_call.1} parent=1 // pred_check
      _
    $region19: #{tpu_custom_call.1} parent=1 // pred_check_branch
      %47 = sbr.rel (0) target = $region21
    $region20: #{tpu_custom_call.1} parent=1 // pred_region
      %49 = dma.done [#allocation5], 256
    $region21: #{tpu_custom_call.1} parent=1 // pred_fallthru
      _
    %50 = vsyncpa [#allocation4], 1
    %51 = vsyncpa [#allocation5], 1

</llo_original>
